<compile_context>
chip_gen: v7x
topology: tpu7x:2x2x1
jax: 0.10.0
libtpu: 0.0.40
codegen_flags: <defaults>
</compile_context>

<pallas_src>
import jax
import jax.numpy as jnp
from jax import lax
from jax.experimental import pallas as pl
from jax.experimental.pallas import tpu as pltpu

# Dims implied by the module's construction.
INPUT_EMBEDDING_DIM = 32
GCN_OUTPUT_DIM = 32
CLASS_NUM = 8


def _linear_kernel(x_ref, w_ref, b_ref, o_ref):
    """o = x @ w.T + b with w in native nn.Linear (N, K) layout.

    Contract x's K axis (1) against w's K axis (1) on the MXU with an f32
    accumulate, add bias, cast once at the end.  No scratch, no grid state.
    """
    acc = lax.dot_general(
        x_ref[...],
        w_ref[...],
        dimension_numbers=(((1,), (1,)), ((), ())),
        preferred_element_type=jnp.float32,
    )
    o_ref[...] = (acc + b_ref[...].astype(jnp.float32)).astype(o_ref.dtype)


def _cost_estimate(M, N, K, itemsize):
    return pl.CostEstimate(
        flops=2 * M * N * K,
        bytes_accessed=itemsize * (M * K + N * K + N + M * N),
        transcendentals=0,
    )


def _linear_single_block(x, weight, bias_2d):
    """Whole problem as one VMEM-resident block (classifier-head sizes)."""
    M, K = x.shape
    N = weight.shape[0]
    vmem = pl.BlockSpec(memory_space=pltpu.MemorySpace.VMEM)
    return pl.pallas_call(
        _linear_kernel,
        out_shape=jax.ShapeDtypeStruct((M, N), x.dtype),
        in_specs=[vmem, vmem, vmem],
        out_specs=vmem,
        cost_estimate=_cost_estimate(M, N, K, x.dtype.itemsize),
    )(x, weight, bias_2d)


def _linear_m_tiled(x, weight, bias_2d, *, tm):
    """Row-tiled path for large batches: grid over M only, full K and N per
    block (no K reduction axis -> no accumulator / pl.when needed)."""
    M, K = x.shape
    N = weight.shape[0]
    assert M % tm == 0
    return pl.pallas_call(
        _linear_kernel,
        out_shape=jax.ShapeDtypeStruct((M, N), x.dtype),
        grid=(M // tm,),
        in_specs=[
            pl.BlockSpec((tm, K), lambda i: (i, 0)),   # x row tile
            pl.BlockSpec((N, K), lambda i: (0, 0)),    # whole weight (native layout)
            pl.BlockSpec((1, N), lambda i: (0, 0)),    # bias (lane-dense)
        ],
        out_specs=pl.BlockSpec((tm, N), lambda i: (i, 0)),
        compiler_params=pltpu.CompilerParams(
            dimension_semantics=("parallel",)          # megacore sharding on v7x
        ),
        cost_estimate=_cost_estimate(M, N, K, x.dtype.itemsize),
    )(x, weight, bias_2d)


def linear(x, weight, bias):
    """Pallas TPU forward of torch.nn.Linear: y = x @ weight.T + bias.

    x:      (M, K)
    weight: (N, K)   -- native PyTorch layout, never transposed in the wrapper
    bias:   (N,)
    """
    M, K = x.shape
    N, K2 = weight.shape
    assert K == K2 and bias.shape == (N,)

    bias_2d = bias.reshape(1, N)

    # Classifier-head / small-batch path: one block, no pipelining overhead.
    # Footprint here is a few hundred KiB at most -> far under any VMEM limit.
    if M <= 512:
        return _linear_single_block(x, weight, bias_2d)

    # Large-batch path: tile rows.  tm=256 matches the v6e/v7x MXU; 128-aligned
    # so it is also fine on v5e.  Pad M up to the tile and pad N to a multiple
    # of 128 so output stores are unmasked (lane-dense), then slice back.
    tm = 256
    n_pad = (-N) % 128
    m_pad = (-M) % tm
    # TODO(synk): for a hot production head, pre-pad weight/bias once at
    # parameter-init time instead of per call.
    w_p = jnp.pad(weight, ((0, n_pad), (0, 0))) if n_pad else weight
    b_p = jnp.pad(bias_2d, ((0, 0), (0, n_pad))) if n_pad else bias_2d
    x_p = jnp.pad(x, ((0, m_pad), (0, 0))) if m_pad else x

    out = _linear_m_tiled(x_p, w_p, b_p, tm=tm)
    return out[:M, :N]


if __name__ == "__main__":
    key = jax.random.PRNGKey(0)
    k1, k2, k3 = jax.random.split(key, 3)

    B = 2
    D_IN = INPUT_EMBEDDING_DIM + GCN_OUTPUT_DIM  # 64

    x = jax.random.normal(k1, (B, D_IN), dtype=jnp.float32)
    weight = jax.random.normal(k2, (CLASS_NUM, D_IN), dtype=jnp.float32) * 0.1
    bias = jax.random.normal(k3, (CLASS_NUM,), dtype=jnp.float32)

    out = linear(x, weight, bias)
    jax.block_until_ready(out)

    # Reference: same semantics as torch.nn.Linear forward.
    ref = x @ weight.T + bias
    assert out.shape == (B, CLASS_NUM), out.shape
    assert jnp.allclose(out, ref, atol=1e-5, rtol=1e-5), "mismatch vs reference"

    print("KERNEL_OK")
</pallas_src>

<mosaic_0001>
module attributes {stable_mosaic.version = 11 : i64} {
  func.func @_linear_kernel(%arg0: memref<2x64xf32, #tpu.memory_space<vmem>>, %arg1: memref<8x64xf32, #tpu.memory_space<vmem>>, %arg2: memref<1x8xf32, #tpu.memory_space<vmem>>, %arg3: memref<2x8xf32, #tpu.memory_space<vmem>>) attributes {dimension_semantics = [], scalar_prefetch = 0 : i64, scratch_operands = 0 : i64, tpu.core_type = #tpu.core_type<tc>} {
    %c0 = arith.constant 0 : index
    %c0_0 = arith.constant 0 : index
    %0 = vector.load %arg0[%c0, %c0_0] : memref<2x64xf32, #tpu.memory_space<vmem>>, vector<2x64xf32>
    %c0_1 = arith.constant 0 : index
    %c0_2 = arith.constant 0 : index
    %1 = vector.load %arg1[%c0_1, %c0_2] : memref<8x64xf32, #tpu.memory_space<vmem>>, vector<8x64xf32>
    %cst = arith.constant dense<0.000000e+00> : vector<2x8xf32>
    %2 = tpu.matmul %0, %1, %cst {dimension_numbers = #tpu.dot_dimension_numbers<[1], [1], [0], [0], [0, 0, 1, 0], [], []>} : vector<2x64xf32>, vector<8x64xf32>, vector<2x8xf32> -> vector<2x8xf32>
    %c0_3 = arith.constant 0 : index
    %c0_4 = arith.constant 0 : index
    %3 = vector.load %arg2[%c0_3, %c0_4] : memref<1x8xf32, #tpu.memory_space<vmem>>, vector<1x8xf32>
    %4 = vector.broadcast %3 : vector<1x8xf32> to vector<2x8xf32>
    %5 = arith.addf %2, %4 : vector<2x8xf32>
    %c0_5 = arith.constant 0 : index
    %c0_6 = arith.constant 0 : index
    %6 = vector.load %arg3[%c0_5, %c0_6] : memref<2x8xf32, #tpu.memory_space<vmem>>, vector<2x8xf32>
    tpu.vector_store %arg3[%c0_5, %c0_6], %5 {strides = array<i32>} : memref<2x8xf32, #tpu.memory_space<vmem>>, vector<2x8xf32>,
    return
  }
}

</mosaic_0001>

<llo_original>
// kernel: tpu_custom_call.1
$region0: #{tpu_custom_call.1}
  #allocation0 [shape = 'u32[]', space=smem, size = 0x4, offset = 0x4, fixed_abs, tag = 'smem constant byte address 0x4 - core index']
  #allocation1 [shape = 'u32[144,128]{1,0:T(1,128)}', space=vmem, size = 0x12000, scoped, tag = 'internal scratch']
  %s0 = inlined_call_operand.hbm [shape: f32[2,64], index: 0, kind: input, shape index: {}]
  %s1 = inlined_call_operand.hbm [shape: f32[8,64], index: 1, kind: input, shape index: {}]
  %s2 = inlined_call_operand.vmem [shape: f32[1,8], index: 2, kind: input, shape index: {}]
  %s3 = inlined_call_operand.hbm [shape: f32[2,8], index: 3, kind: output, shape index: {}]
  %s4 = sld [smem:[#allocation0]]
  $region30: #{tpu_custom_call.1} parent=0
    _
  %s6 = ssub.s32 1, %s4
  %s7 = scalar_select 0, %s6, %s4
  $region1: #{tpu_custom_call.1} parent=0
    #allocation2 [shape = 'u8[1024]{0}', space=vmem, size = 0x400, scoped, tag = 'input window, operand 0, single buffered']
    #allocation3 [shape = 's32[1]{0}', space=sflag, size = 0x4, scoped, tag = 'scoped memory for tpu_custom_call.1']
    #allocation4 [shape = 's32[1]{0}', space=sflag, size = 0x4, scoped, tag = 'scoped memory for tpu_custom_call.1']
    #allocation5 [shape = 'u8[4096]{0}', space=vmem, size = 0x1000, scoped, tag = 'input window, operand 1, single buffered']
    #allocation6 [shape = 's32[1]{0}', space=sflag, size = 0x4, scoped, tag = 'scoped memory for tpu_custom_call.1']
    #allocation7 [shape = 'u8[1024]{0}', space=vmem, size = 0x400, scoped, tag = 'output window, operand 0, single buffered']
    %8 = vsyncpa [#allocation3], 0
    %9 = vsyncpa [#allocation6], 0
    %10 = vsyncpa [#allocation4], 0
    // Predicated region
    $region2: #{tpu_custom_call.1} parent=1 // pred_check
      _
    $region3: #{tpu_custom_call.1} parent=1 // pred_check_branch
      %12 = sbr.rel (0) target = $region5
    $region4: #{tpu_custom_call.1} parent=1 // pred_region
      %s14 = ssub.s32 32, 32
      %15 = vsyncadd [#allocation3], %s14
      %s17 = sshll.u32 [#allocation2], 4
      %s18 = int_to_ptr.vmem [resolvable:$true] %s17
      %20 = dma.hbm_to_vmem [thread:$0]  %s0, 32, %s18, [#allocation3]
    $region5: #{tpu_custom_call.1} parent=1 // pred_fallthru
      _
    // Predicated region
    $region6: #{tpu_custom_call.1} parent=1 // pred_check
      _
    $region7: #{tpu_custom_call.1} parent=1 // pred_check_branch
      %22 = sbr.rel (0) target = $region9
    $region8: #{tpu_custom_call.1} parent=1 // pred_region
      %s24 = ssub.s32 128, 128
      %25 = vsyncadd [#allocation6], %s24
      %s27 = sshll.u32 [#allocation5], 4
      %s28 = int_to_ptr.vmem [resolvable:$true] %s27
      %30 = dma.hbm_to_vmem [thread:$0]  %s1, 128, %s28, [#allocation6]
    $region9: #{tpu_custom_call.1} parent=1 // pred_fallthru
      _
    // Predicated region
    $region10: #{tpu_custom_call.1} parent=1 // pred_check
      _
    $region11: #{tpu_custom_call.1} parent=1 // pred_check_branch
      %32 = sbr.rel (0) target = $region13
    $region12: #{tpu_custom_call.1} parent=1 // pred_region
      _
    $region13: #{tpu_custom_call.1} parent=1 // pred_fallthru
      _
    // Predicated region
    $region14: #{tpu_custom_call.1} parent=1 // pred_check
      _
    $region15: #{tpu_custom_call.1} parent=1 // pred_check_branch
      %34 = sbr.rel (0) target = $region17
    $region16: #{tpu_custom_call.1} parent=1 // pred_region
      %35 = dma.done [#allocation3], 32
    $region17: #{tpu_custom_call.1} parent=1 // pred_fallthru
      _
    // Predicated region
    $region18: #{tpu_custom_call.1} parent=1 // pred_check
      _
    $region19: #{tpu_custom_call.1} parent=1 // pred_check_branch
      %37 = sbr.rel (0) target = $region21
    $region20: #{tpu_custom_call.1} parent=1 // pred_region
      %38 = dma.done [#allocation6], 128
    $region21: #{tpu_custom_call.1} parent=1 // pred_fallthru
      _
    %v39 = vld [vmem:[#allocation2] sm:$0x3]
    %v40 = vld [vmem:[#allocation5] sm:$0xff]
    %v41 = vld [vmem:[%s2] sm:$0x1]
    %v43 = vlaneseq
    %v44 = vshrl.u32 %v43, 7
    %v45 = vsub.s32 0, %v44
    %v46 = vrot.slane %v41, %v45
    %vm48 = vcmask 523264
    %v50 = vsel %vm48, %v39, 0
    %v53 = vsel %vm48, %v40, 0
    %55 = vmatprep.subr.mxu0 0.0
    %56 = vmatpush1.xpose.msra.mxu0 %v53
    %57 = vmatprep.subr.mxu0 0.0
    %58 = vmatpush1.xpose.msra.mxu0 0.0
    %59 = vmatprep.subr.mxu0 0.0
    %60 = vmatpush1.xpose.msra.mxu0 0.0
    %61 = vmatprep.subr.mxu0 0.0
    %62 = vmatpush1.xpose.msra.mxu0 0.0
    %63 = vmatprep.subr.mxu0 0.0
    %64 = vmatpush1.xpose.msra.mxu0 0.0
    %65 = vmatprep.subr.mxu0 0.0
    %66 = vmatpush1.xpose.msra.mxu0 0.0
    %67 = vmatprep.subr.mxu0 0.0
    %68 = vmatpush1.xpose.msra.mxu0 0.0
    %69 = vmatprep.subr.mxu0 0.0
    %70 = vmatpush1.xpose.msra.mxu0 0.0
    %71 = vmatprep.subr.mxu0 0.0
    %72 = vmatpush1.xpose.msra.mxu0 0.0
    %73 = vmatprep.subr.mxu0 0.0
    %74 = vmatpush1.xpose.msra.mxu0 0.0
    %75 = vmatprep.subr.mxu0 0.0
    %76 = vmatpush1.xpose.msra.mxu0 0.0
    %77 = vmatprep.subr.mxu0 0.0
    %78 = vmatpush1.xpose.msra.mxu0 0.0
    %79 = vmatprep.subr.mxu0 0.0
    %80 = vmatpush1.xpose.msra.mxu0 0.0
    %81 = vmatprep.subr.mxu0 0.0
    %82 = vmatpush1.xpose.msra.mxu0 0.0
    %83 = vmatprep.subr.mxu0 0.0
    %84 = vmatpush1.xpose.msra.mxu0 0.0
    %85 = vmatprep.subr.mxu0 0.0
    %86 = vmatpush1.xpose.msra.mxu0 0.0
    %87 = vmatprep.subr.mxu0 0.0
    %88 = vmatpush1.xpose.msra.mxu0 0.0
    %89 = vmatprep.subr.mxu0 0.0
    %90 = vmatpush1.xpose.msra.mxu0 0.0
    %91 = vmatprep.subr.mxu0 0.0
    %92 = vmatpush1.xpose.msra.mxu0 0.0
    %93 = vmatprep.subr.mxu0 0.0
    %94 = vmatpush1.xpose.msra.mxu0 0.0
    %95 = vmatprep.subr.mxu0 0.0
    %96 = vmatpush1.xpose.msra.mxu0 0.0
    %97 = vmatprep.subr.mxu0 0.0
    %98 = vmatpush1.xpose.msra.mxu0 0.0
    %99 = vmatprep.subr.mxu0 0.0
    %100 = vmatpush1.xpose.msra.mxu0 0.0
    %101 = vmatprep.subr.mxu0 0.0
    %102 = vmatpush1.xpose.msra.mxu0 0.0
    %103 = vmatprep.subr.mxu0 0.0
    %104 = vmatpush1.xpose.msra.mxu0 0.0
    %105 = vmatprep.subr.mxu0 0.0
    %106 = vmatpush1.xpose.msra.mxu0 0.0
    %107 = vmatprep.subr.mxu0 0.0
    %108 = vmatpush1.xpose.msra.mxu0 0.0
    %109 = vmatprep.subr.mxu0 0.0
    %110 = vmatpush1.xpose.msra.mxu0 0.0
    %111 = vmatprep.subr.mxu0 0.0
    %112 = vmatpush1.xpose.msra.mxu0 0.0
    %113 = vmatprep.subr.mxu0 0.0
    %114 = vmatpush1.xpose.msra.mxu0 0.0
    %115 = vmatprep.subr.mxu0 0.0
    %116 = vmatpush1.xpose.msra.mxu0 0.0
    %117 = vmatprep.subr.mxu0 0.0
    %118 = vmatpush1.xpose.msra.mxu0 0.0
    %119 = vmatprep.mubr.f32.mxu0 0.0
    %120 = vmatmul.mubr.f32.gmra.mrb[0].mxu0 %v50
    %v121 = vpop.f32.mrb[0].mxu0
    %v122 = vadd.f32 %v46, %v121
    %v123 = vpop.f32.mrb[0].mxu0
    %124 = vdwg.mxu0
    %vm125 = vcmask 58368
    %126 = vst.msk [vmem:[#allocation7] sm:$0x3] %vm125, %v122
    // Predicated region
    $region22: #{tpu_custom_call.1} parent=1 // pred_check
      _
    $region23: #{tpu_custom_call.1} parent=1 // pred_check_branch
      %128 = sbr.rel (0) target = $region25
    $region24: #{tpu_custom_call.1} parent=1 // pred_region
      %s130 = ssub.s32 32, 32
      %131 = vsyncadd [#allocation4], %s130
      %s133 = sshll.u32 [#allocation7], 4
      %s134 = int_to_ptr.vmem [resolvable:$true] %s133
      %136 = dma.vmem_to_hbm [thread:$0]  %s134, 32, %s3, [#allocation4]
    $region25: #{tpu_custom_call.1} parent=1 // pred_fallthru
      _
    // Predicated region
    $region26: #{tpu_custom_call.1} parent=1 // pred_check
      _
    $region27: #{tpu_custom_call.1} parent=1 // pred_check_branch
      %138 = sbr.rel (0) target = $region29
    $region28: #{tpu_custom_call.1} parent=1 // pred_region
      %139 = dma.done [#allocation4], 32
    $region29: #{tpu_custom_call.1} parent=1 // pred_fallthru
      _
    %140 = vsyncpa [#allocation3], 1
    %141 = vsyncpa [#allocation6], 1
    %142 = vsyncpa [#allocation4], 1

</llo_original>
